<compile_context>
chip_gen: v7x
topology: tpu7x:2x2x1
jax: 0.10.0
libtpu: 0.0.40
codegen_flags: <defaults>
</compile_context>

<pallas_src>
import functools

import jax
import jax.numpy as jnp
from jax.experimental import pallas as pl
from jax.experimental.pallas import tpu as pltpu


def classifier_kernel(num_class,
                      zie_ref, zre_ref, zsex_ref, zage_ref,
                      wi_ref, wr_ref, wd_ref, b3_ref,
                      out_ref):
    """Fully fused forward with pre-collapsed weights:
       li = zie @ (Wimg.T @ Wci) + (b_img @ Wci + bc/3)
       lr = zre @ (Wrep.T @ Wcr) + (b_rep @ Wcr + bc/3)
       ld = [zsex|zage] @ (Wsa.T @ Wcd) + (b_sa @ Wcd + bc/3)
       z  = softmax(li + lr + ld)          (== softmax(z_ @ Wc.T + b))
       contribs = softmax over (li, lr, ld) per (sample, class)
       out = [z | c0_i c0_r c0_d | c1_i c1_r c1_d | ...]  (one lane slab)
    """
    f32 = jnp.float32
    nc = num_class

    # One tiny MXU dot per modality, straight to the partial logits.
    li = jnp.dot(zie_ref[...], wi_ref[...],
                 preferred_element_type=f32) + b3_ref[0:1, :]
    lr = jnp.dot(zre_ref[...], wr_ref[...],
                 preferred_element_type=f32) + b3_ref[1:2, :]
    # Demographic branch: zsa = [zsex | zage] (B, 2).  Done as two VPU
    # broadcast-multiplies against the 2-row collapsed weight, avoiding an
    # in-kernel 1-lane concat and a degenerate (B,2)x(2,nc) MXU op.
    ld = (zsex_ref[...] * wd_ref[0:1, :]
          + zage_ref[...] * wd_ref[1:2, :]
          + b3_ref[2:3, :])

    # Final class probabilities: softmax(li + lr + ld).
    full = li + lr + ld
    e_full = jnp.exp(full - jnp.max(full, axis=-1, keepdims=True))
    inv_full = pl.reciprocal(jnp.sum(e_full, axis=-1, keepdims=True),
                             approx=False)
    z = e_full * inv_full

    # XAI contributions: softmax over the 3 partial logits (per sample, class).
    m = jnp.maximum(jnp.maximum(li, lr), ld)
    ei = jnp.exp(li - m)
    er = jnp.exp(lr - m)
    ed = jnp.exp(ld - m)
    inv = pl.reciprocal(ei + er + ed, approx=False)
    ci, cr, cd = ei * inv, er * inv, ed * inv

    # Interleave contributions class-major so the wrapper only reshapes
    # (no transpose dispatch): [z | c0_i c0_r c0_d | c1_i c1_r c1_d | ...].
    pieces = [z]
    for c in range(nc):
        pieces += [ci[:, c:c + 1], cr[:, c:c + 1], cd[:, c:c + 1]]
    out_ref[...] = jnp.concatenate(pieces, axis=-1)


def pack_params(params):
    """One-time weight packing: collapse each Linear->Linear chain."""
    w_img, w_rep, w_sa = params["w_img"], params["w_rep"], params["w_sa"]
    b_img, b_rep, b_sa = params["b_img"], params["b_rep"], params["b_sa"]
    Wc, bc = params["w_cls"], params["b_cls"]
    mm_dim, img_dim = w_img.shape
    rep_dim = w_rep.shape[1]
    nc = Wc.shape[0]

    Wci = Wc[:, :mm_dim].T               # (mm_dim, nc)
    Wcr = Wc[:, mm_dim:2 * mm_dim].T     # (mm_dim, nc)
    Wcd = Wc[:, 2 * mm_dim:].T           # (mm_dim, nc)

    # Collapsed (projection @ classifier-slice) weights.
    w_img_tot = (w_img.T @ Wci).astype(jnp.float32)   # (img_dim, nc)
    w_rep_tot = (w_rep.T @ Wcr).astype(jnp.float32)   # (rep_dim, nc)
    w_sa_tot = (w_sa.T @ Wcd).astype(jnp.float32)     # (2, nc): row0=zsex, row1=zage

    # Per-modality collapsed biases, stacked as (3, nc): rows = img / rep / demo.
    b3 = jnp.stack([b_img @ Wci + bc / 3.0,
                    b_rep @ Wcr + bc / 3.0,
                    b_sa @ Wcd + bc / 3.0], axis=0).astype(jnp.float32)

    return dict(w_img_tot=w_img_tot, w_rep_tot=w_rep_tot, w_sa_tot=w_sa_tot,
                b3=b3, img_dim=img_dim, rep_dim=rep_dim, mm_dim=mm_dim,
                num_class=nc)


def classifier_forward(zie, zre, zage, zsex, packed, *, max_batch_tile=1024):
    B, img_dim = zie.shape
    rep_dim = zre.shape[1]
    nc = packed["num_class"]

    zie = zie.astype(jnp.float32)
    zre = zre.astype(jnp.float32)
    # (B,) -> (B, 1) column vectors (metadata reshape; no concat slab).
    zsex2 = zsex.astype(jnp.float32).reshape(B, 1)
    zage2 = zage.astype(jnp.float32).reshape(B, 1)

    # 1-D batch grid with resident weights; degenerates to one step at small B.
    bt = B if B <= max_batch_tile else max_batch_tile  # multiple of 8 when < B
    grid = (pl.cdiv(B, bt),)
    batch_map = lambda i: (i, 0)
    weight_map = lambda i: (0, 0)

    out = pl.pallas_call(
        functools.partial(classifier_kernel, nc),
        out_shape=jax.ShapeDtypeStruct((B, 4 * nc), jnp.float32),
        grid=grid,
        in_specs=[
            pl.BlockSpec((bt, img_dim), batch_map),
            pl.BlockSpec((bt, rep_dim), batch_map),
            pl.BlockSpec((bt, 1), batch_map),
            pl.BlockSpec((bt, 1), batch_map),
            pl.BlockSpec((img_dim, nc), weight_map),
            pl.BlockSpec((rep_dim, nc), weight_map),
            pl.BlockSpec((2, nc), weight_map),
            pl.BlockSpec((3, nc), weight_map),
        ],
        out_specs=pl.BlockSpec((bt, 4 * nc), batch_map),
        compiler_params=pltpu.CompilerParams(
            dimension_semantics=("parallel",)),
    )(zie, zre, zsex2, zage2,
      packed["w_img_tot"], packed["w_rep_tot"], packed["w_sa_tot"],
      packed["b3"])

    # Slab is already class-major interleaved: slice + reshape only.
    z = out[:, :nc]
    contris = out[:, nc:].reshape(B, nc, 3)
    return z, contris


def classifier_reference(zie, zre, zage, zsex, params):
    """Pure-JAX reference matching the PyTorch forward (proj, binary)."""
    mm = params["w_sa"].shape[0]
    zim = zie @ params["w_img"].T + params["b_img"]
    zrm = zre @ params["w_rep"].T + params["b_rep"]
    zsa = jnp.concatenate([zsex[:, None], zage[:, None]], axis=-1)
    zsa_ = zsa @ params["w_sa"].T + params["b_sa"]
    z_ = jnp.concatenate([zim, zrm, zsa_], axis=-1)

    Wc, bc = params["w_cls"], params["b_cls"]
    li = z_[:, :mm] @ Wc[:, :mm].T + bc / 3.0
    lr = z_[:, mm:2 * mm] @ Wc[:, mm:2 * mm].T + bc / 3.0
    ld = z_[:, 2 * mm:] @ Wc[:, 2 * mm:].T + bc / 3.0
    contris = jax.nn.softmax(jnp.stack([li, lr, ld], axis=-1), axis=-1)
    z = jax.nn.softmax(z_ @ Wc.T + bc, axis=-1)
    return z, contris


def init_params(key, img_dim, rep_dim, mm_dim, num_class):
    """Deterministic nn.Linear-style init (uniform(-1/sqrt(fan_in), ...))."""
    def linear(k, out_f, in_f):
        kw, kb = jax.random.split(k)
        bound = 1.0 / jnp.sqrt(in_f)
        w = jax.random.uniform(kw, (out_f, in_f), jnp.float32, -bound, bound)
        b = jax.random.uniform(kb, (out_f,), jnp.float32, -bound, bound)
        return w, b

    k1, k2, k3, k4 = jax.random.split(key, 4)
    w_img, b_img = linear(k1, mm_dim, img_dim)         # proj_img
    w_rep, b_rep = linear(k2, mm_dim, rep_dim)         # proj_rep
    w_sa, b_sa = linear(k3, mm_dim, 2)                 # sa_embeddings
    w_cls, b_cls = linear(k4, num_class, 3 * mm_dim)   # FC_mm_proj_binary[0]
    return dict(w_img=w_img, b_img=b_img, w_rep=w_rep, b_rep=b_rep,
                w_sa=w_sa, b_sa=b_sa, w_cls=w_cls, b_cls=b_cls)


if __name__ == "__main__":
    B, img_dim, rep_dim, mm_dim, num_class = 8, 32, 32, 32, 2

    key = jax.random.PRNGKey(0)
    kp, kzie, kzre, kage, ksex = jax.random.split(key, 5)
    params = init_params(kp, img_dim, rep_dim, mm_dim, num_class)
    packed = pack_params(params)   # one-time weight collapsing (not per call)

    zie = jax.random.normal(kzie, (B, img_dim), jnp.float32)
    zre = jax.random.normal(kzre, (B, rep_dim), jnp.float32)
    zage = jax.random.uniform(kage, (B,), jnp.float32, 0.0, 1.0)
    zsex = (jax.random.uniform(ksex, (B,), jnp.float32) > 0.5).astype(jnp.float32)

    z, contris = classifier_forward(zie, zre, zage, zsex, packed)
    jax.block_until_ready((z, contris))

    z_ref, contris_ref = classifier_reference(zie, zre, zage, zsex, params)
    assert z.shape == (B, num_class) and contris.shape == (B, num_class, 3)
    # Tolerance-based check: the pack-time Linear-compose-Linear reassociation
    # changes low-order bits relative to the two-matmul reference.
    assert jnp.allclose(z, z_ref, atol=1e-4, rtol=1e-4)
    assert jnp.allclose(contris, contris_ref, atol=1e-4, rtol=1e-4)

    print("KERNEL_OK")
</pallas_src>

<mosaic_0001>
module attributes {stable_mosaic.version = 11 : i64} {
  func.func @classifier_kernel(%arg0: i32, %arg1: memref<8x32xf32, #tpu.memory_space<vmem>>, %arg2: memref<8x32xf32, #tpu.memory_space<vmem>>, %arg3: memref<8x1xf32, #tpu.memory_space<vmem>>, %arg4: memref<8x1xf32, #tpu.memory_space<vmem>>, %arg5: memref<32x2xf32, #tpu.memory_space<vmem>>, %arg6: memref<32x2xf32, #tpu.memory_space<vmem>>, %arg7: memref<2x2xf32, #tpu.memory_space<vmem>>, %arg8: memref<3x2xf32, #tpu.memory_space<vmem>>, %arg9: memref<8x8xf32, #tpu.memory_space<vmem>>) attributes {dimension_semantics = [#tpu.dimension_semantics<parallel>], iteration_bounds = array<i64: 1>, scalar_prefetch = 0 : i64, scratch_operands = 0 : i64, tpu.core_type = #tpu.core_type<tc>, window_params = [{transform_indices = @transform_0, window_bounds = array<i64: 8, 32>}, {transform_indices = @transform_1, window_bounds = array<i64: 8, 32>}, {transform_indices = @transform_2, window_bounds = array<i64: 8, 1>}, {transform_indices = @transform_3, window_bounds = array<i64: 8, 1>}, {pipeline_mode = #tpu.pipeline_mode<synchronous>, transform_indices = @transform_4, window_bounds = array<i64: 32, 2>}, {pipeline_mode = #tpu.pipeline_mode<synchronous>, transform_indices = @transform_5, window_bounds = array<i64: 32, 2>}, {pipeline_mode = #tpu.pipeline_mode<synchronous>, transform_indices = @transform_6, window_bounds = array<i64: 2, 2>}, {pipeline_mode = #tpu.pipeline_mode<synchronous>, transform_indices = @transform_7, window_bounds = array<i64: 3, 2>}, {transform_indices = @transform_8, window_bounds = array<i64: 8, 8>}]} {
    %c0 = arith.constant 0 : index
    %c0_0 = arith.constant 0 : index
    %0 = vector.load %arg1[%c0, %c0_0] : memref<8x32xf32, #tpu.memory_space<vmem>>, vector<8x32xf32>
    %c0_1 = arith.constant 0 : index
    %c0_2 = arith.constant 0 : index
    %1 = vector.load %arg5[%c0_1, %c0_2] : memref<32x2xf32, #tpu.memory_space<vmem>>, vector<32x2xf32>
    %cst = arith.constant dense<0.000000e+00> : vector<8x2xf32>
    %2 = tpu.matmul %0, %1, %cst {dimension_numbers = #tpu.dot_dimension_numbers<[1], [0], [0], [1], [0, 0, 1, 1], [], []>} : vector<8x32xf32>, vector<32x2xf32>, vector<8x2xf32> -> vector<8x2xf32>
    %c0_3 = arith.constant 0 : index
    %c0_4 = arith.constant 0 : index
    %3 = vector.load %arg8[%c0_3, %c0_4] : memref<3x2xf32, #tpu.memory_space<vmem>>, vector<1x2xf32>
    %4 = vector.broadcast %3 : vector<1x2xf32> to vector<8x2xf32>
    %5 = arith.addf %2, %4 : vector<8x2xf32>
    %c0_5 = arith.constant 0 : index
    %c0_6 = arith.constant 0 : index
    %6 = vector.load %arg2[%c0_5, %c0_6] : memref<8x32xf32, #tpu.memory_space<vmem>>, vector<8x32xf32>
    %c0_7 = arith.constant 0 : index
    %c0_8 = arith.constant 0 : index
    %7 = vector.load %arg6[%c0_7, %c0_8] : memref<32x2xf32, #tpu.memory_space<vmem>>, vector<32x2xf32>
    %cst_9 = arith.constant dense<0.000000e+00> : vector<8x2xf32>
    %8 = tpu.matmul %6, %7, %cst_9 {dimension_numbers = #tpu.dot_dimension_numbers<[1], [0], [0], [1], [0, 0, 1, 1], [], []>} : vector<8x32xf32>, vector<32x2xf32>, vector<8x2xf32> -> vector<8x2xf32>
    %c1 = arith.constant 1 : index
    %c0_10 = arith.constant 0 : index
    %9 = vector.load %arg8[%c1, %c0_10] : memref<3x2xf32, #tpu.memory_space<vmem>>, vector<1x2xf32>
    %10 = vector.broadcast %9 : vector<1x2xf32> to vector<8x2xf32>
    %11 = arith.addf %8, %10 : vector<8x2xf32>
    %c0_11 = arith.constant 0 : index
    %c0_12 = arith.constant 0 : index
    %12 = vector.load %arg3[%c0_11, %c0_12] : memref<8x1xf32, #tpu.memory_space<vmem>>, vector<8x1xf32>
    %c0_13 = arith.constant 0 : index
    %c0_14 = arith.constant 0 : index
    %13 = vector.load %arg7[%c0_13, %c0_14] : memref<2x2xf32, #tpu.memory_space<vmem>>, vector<1x2xf32>
    %14 = vector.broadcast %12 : vector<8x1xf32> to vector<8x2xf32>
    %15 = vector.broadcast %13 : vector<1x2xf32> to vector<8x2xf32>
    %16 = arith.mulf %14, %15 : vector<8x2xf32>
    %c0_15 = arith.constant 0 : index
    %c0_16 = arith.constant 0 : index
    %17 = vector.load %arg4[%c0_15, %c0_16] : memref<8x1xf32, #tpu.memory_space<vmem>>, vector<8x1xf32>
    %c1_17 = arith.constant 1 : index
    %c0_18 = arith.constant 0 : index
    %18 = vector.load %arg7[%c1_17, %c0_18] : memref<2x2xf32, #tpu.memory_space<vmem>>, vector<1x2xf32>
    %19 = vector.broadcast %17 : vector<8x1xf32> to vector<8x2xf32>
    %20 = vector.broadcast %18 : vector<1x2xf32> to vector<8x2xf32>
    %21 = arith.mulf %19, %20 : vector<8x2xf32>
    %22 = arith.addf %16, %21 : vector<8x2xf32>
    %c2 = arith.constant 2 : index
    %c0_19 = arith.constant 0 : index
    %23 = vector.load %arg8[%c2, %c0_19] : memref<3x2xf32, #tpu.memory_space<vmem>>, vector<1x2xf32>
    %24 = vector.broadcast %23 : vector<1x2xf32> to vector<8x2xf32>
    %25 = arith.addf %22, %24 : vector<8x2xf32>
    %26 = arith.addf %5, %11 : vector<8x2xf32>
    %27 = arith.addf %26, %25 : vector<8x2xf32>
    %cst_20 = arith.constant dense<0xFF800000> : vector<8xf32>
    %28 = vector.multi_reduction <maximumf>, %27, %cst_20 [1] : vector<8x2xf32> to vector<8xf32>
    %29 = vector.shape_cast %28 : vector<8xf32> to vector<8x1xf32>
    %30 = vector.broadcast %29 : vector<8x1xf32> to vector<8x2xf32>
    %31 = arith.subf %27, %30 : vector<8x2xf32>
    %32 = math.exp %31 : vector<8x2xf32>
    %cst_21 = arith.constant dense<0.000000e+00> : vector<8xf32>
    %33 = vector.multi_reduction <add>, %32, %cst_21 [1] : vector<8x2xf32> to vector<8xf32>
    %34 = vector.shape_cast %33 : vector<8xf32> to vector<8x1xf32>
    %35 = tpu.reciprocal %34 : vector<8x1xf32> -> vector<8x1xf32>
    %36 = vector.broadcast %35 : vector<8x1xf32> to vector<8x2xf32>
    %37 = arith.mulf %32, %36 : vector<8x2xf32>
    %38 = arith.maximumf %5, %11 : vector<8x2xf32>
    %39 = arith.maximumf %38, %25 : vector<8x2xf32>
    %40 = arith.subf %5, %39 : vector<8x2xf32>
    %41 = math.exp %40 : vector<8x2xf32>
    %42 = arith.subf %11, %39 : vector<8x2xf32>
    %43 = math.exp %42 : vector<8x2xf32>
    %44 = arith.subf %25, %39 : vector<8x2xf32>
    %45 = math.exp %44 : vector<8x2xf32>
    %46 = arith.addf %41, %43 : vector<8x2xf32>
    %47 = arith.addf %46, %45 : vector<8x2xf32>
    %48 = tpu.reciprocal %47 : vector<8x2xf32> -> vector<8x2xf32>
    %49 = arith.mulf %41, %48 : vector<8x2xf32>
    %50 = arith.mulf %43, %48 : vector<8x2xf32>
    %51 = arith.mulf %45, %48 : vector<8x2xf32>
    %52 = vector.extract_strided_slice %49 {offsets = [0, 0], sizes = [8, 1], strides = [1, 1]} : vector<8x2xf32> to vector<8x1xf32>
    %53 = vector.extract_strided_slice %50 {offsets = [0, 0], sizes = [8, 1], strides = [1, 1]} : vector<8x2xf32> to vector<8x1xf32>
    %54 = vector.extract_strided_slice %51 {offsets = [0, 0], sizes = [8, 1], strides = [1, 1]} : vector<8x2xf32> to vector<8x1xf32>
    %55 = vector.extract_strided_slice %49 {offsets = [0, 1], sizes = [8, 1], strides = [1, 1]} : vector<8x2xf32> to vector<8x1xf32>
    %56 = vector.extract_strided_slice %50 {offsets = [0, 1], sizes = [8, 1], strides = [1, 1]} : vector<8x2xf32> to vector<8x1xf32>
    %57 = vector.extract_strided_slice %51 {offsets = [0, 1], sizes = [8, 1], strides = [1, 1]} : vector<8x2xf32> to vector<8x1xf32>
    %58 = tpu.concatenate %37, %52, %53, %54, %55, %56, %57 in 1 : vector<8x2xf32>, vector<8x1xf32>, vector<8x1xf32>, vector<8x1xf32>, vector<8x1xf32>, vector<8x1xf32>, vector<8x1xf32> -> vector<8x8xf32>
    %c0_22 = arith.constant 0 : index
    %c0_23 = arith.constant 0 : index
    %59 = vector.load %arg9[%c0_22, %c0_23] : memref<8x8xf32, #tpu.memory_space<vmem>>, vector<8x8xf32>
    tpu.vector_store %arg9[%c0_22, %c0_23], %58 {strides = array<i32>} : memref<8x8xf32, #tpu.memory_space<vmem>>, vector<8x8xf32>,
    return
  }
  func.func @transform_0(%arg0: i32) -> (i32, i32) {
    %c0_i32 = arith.constant 0 : i32
    %c0_i32_0 = arith.constant 0 : i32
    return %arg0, %c0_i32 : i32, i32
  }
  func.func @transform_1(%arg0: i32) -> (i32, i32) {
    %c0_i32 = arith.constant 0 : i32
    %c0_i32_0 = arith.constant 0 : i32
    return %arg0, %c0_i32 : i32, i32
  }
  func.func @transform_2(%arg0: i32) -> (i32, i32) {
    %c0_i32 = arith.constant 0 : i32
    %c0_i32_0 = arith.constant 0 : i32
    return %arg0, %c0_i32 : i32, i32
  }
  func.func @transform_3(%arg0: i32) -> (i32, i32) {
    %c0_i32 = arith.constant 0 : i32
    %c0_i32_0 = arith.constant 0 : i32
    return %arg0, %c0_i32 : i32, i32
  }
  func.func @transform_4(%arg0: i32) -> (i32, i32) {
    %c0_i32 = arith.constant 0 : i32
    %c0_i32_0 = arith.constant 0 : i32
    %c0_i32_1 = arith.constant 0 : i32
    return %c0_i32, %c0_i32_0 : i32, i32
  }
  func.func @transform_5(%arg0: i32) -> (i32, i32) {
    %c0_i32 = arith.constant 0 : i32
    %c0_i32_0 = arith.constant 0 : i32
    %c0_i32_1 = arith.constant 0 : i32
    return %c0_i32, %c0_i32_0 : i32, i32
  }
  func.func @transform_6(%arg0: i32) -> (i32, i32) {
    %c0_i32 = arith.constant 0 : i32
    %c0_i32_0 = arith.constant 0 : i32
    %c0_i32_1 = arith.constant 0 : i32
    return %c0_i32, %c0_i32_0 : i32, i32
  }
  func.func @transform_7(%arg0: i32) -> (i32, i32) {
    %c0_i32 = arith.constant 0 : i32
    %c0_i32_0 = arith.constant 0 : i32
    %c0_i32_1 = arith.constant 0 : i32
    return %c0_i32, %c0_i32_0 : i32, i32
  }
  func.func @transform_8(%arg0: i32) -> (i32, i32) {
    %c0_i32 = arith.constant 0 : i32
    %c0_i32_0 = arith.constant 0 : i32
    return %arg0, %c0_i32 : i32, i32
  }
}

</mosaic_0001>

<llo_original>
// kernel: tpu_custom_call.1
$region0: #{tpu_custom_call.1}
  #allocation0 [shape = 'u32[]', space=smem, size = 0x4, offset = 0x4, fixed_abs, tag = 'smem constant byte address 0x4 - core index']
  #allocation1 [shape = 'u32[144,128]{1,0:T(1,128)}', space=vmem, size = 0x12000, scoped, tag = 'internal scratch']
  %s0 = inlined_call_operand.vmem [shape: f32[8,32], index: 0, kind: input, shape index: {}]
  %s1 = inlined_call_operand.vmem [shape: f32[8,32], index: 1, kind: input, shape index: {}]
  %s2 = inlined_call_operand.vmem [shape: f32[8,1], index: 2, kind: input, shape index: {}]
  %s3 = inlined_call_operand.vmem [shape: f32[8,1], index: 3, kind: input, shape index: {}]
  %s4 = inlined_call_operand.vmem [shape: f32[32,2], index: 4, kind: input, shape index: {}]
  %s5 = inlined_call_operand.vmem [shape: f32[32,2], index: 5, kind: input, shape index: {}]
  %s6 = inlined_call_operand.vmem [shape: f32[2,2], index: 6, kind: input, shape index: {}]
  %s7 = inlined_call_operand.vmem [shape: f32[3,2], index: 7, kind: input, shape index: {}]
  %s8 = inlined_call_operand.hbm [shape: f32[8,8], index: 8, kind: output, shape index: {}]
  %s9 = sld [smem:[#allocation0]]
  $region42: #{tpu_custom_call.1} parent=0
    _
  %s11 = ssub.s32 1, %s9
  %s12 = scalar_select 0, %s11, %s9
  $region1: #{tpu_custom_call.1} parent=0
    #allocation2 [shape = 'u8[4096]{0}', space=vmem, size = 0x1000, scoped, tag = 'output window, operand 0, single buffered']
    #allocation3 [shape = 's32[1]{0}', space=sflag, size = 0x4, scoped, tag = 'scoped memory for tpu_custom_call.1']
    %13 = vsyncpa [#allocation3], 0
    // Predicated region
    $region2: #{tpu_custom_call.1} parent=1 // pred_check
      _
    $region3: #{tpu_custom_call.1} parent=1 // pred_check_branch
      %15 = sbr.rel (0) target = $region5
    $region4: #{tpu_custom_call.1} parent=1 // pred_region
      _
    $region5: #{tpu_custom_call.1} parent=1 // pred_fallthru
      _
    // Predicated region
    $region6: #{tpu_custom_call.1} parent=1 // pred_check
      _
    $region7: #{tpu_custom_call.1} parent=1 // pred_check_branch
      %17 = sbr.rel (0) target = $region9
    $region8: #{tpu_custom_call.1} parent=1 // pred_region
      _
    $region9: #{tpu_custom_call.1} parent=1 // pred_fallthru
      _
    // Predicated region
    $region10: #{tpu_custom_call.1} parent=1 // pred_check
      _
    $region11: #{tpu_custom_call.1} parent=1 // pred_check_branch
      %19 = sbr.rel (0) target = $region13
    $region12: #{tpu_custom_call.1} parent=1 // pred_region
      _
    $region13: #{tpu_custom_call.1} parent=1 // pred_fallthru
      _
    // Predicated region
    $region14: #{tpu_custom_call.1} parent=1 // pred_check
      _
    $region15: #{tpu_custom_call.1} parent=1 // pred_check_branch
      %21 = sbr.rel (0) target = $region17
    $region16: #{tpu_custom_call.1} parent=1 // pred_region
      _
    $region17: #{tpu_custom_call.1} parent=1 // pred_fallthru
      _
    // Predicated region
    $region18: #{tpu_custom_call.1} parent=1 // pred_check
      _
    $region19: #{tpu_custom_call.1} parent=1 // pred_check_branch
      %23 = sbr.rel (0) target = $region21
    $region20: #{tpu_custom_call.1} parent=1 // pred_region
      _
    $region21: #{tpu_custom_call.1} parent=1 // pred_fallthru
      _
    // Predicated region
    $region22: #{tpu_custom_call.1} parent=1 // pred_check
      _
    $region23: #{tpu_custom_call.1} parent=1 // pred_check_branch
      %25 = sbr.rel (0) target = $region25
    $region24: #{tpu_custom_call.1} parent=1 // pred_region
      _
    $region25: #{tpu_custom_call.1} parent=1 // pred_fallthru
      _
    // Predicated region
    $region26: #{tpu_custom_call.1} parent=1 // pred_check
      _
    $region27: #{tpu_custom_call.1} parent=1 // pred_check_branch
      %27 = sbr.rel (0) target = $region29
    $region28: #{tpu_custom_call.1} parent=1 // pred_region
      _
    $region29: #{tpu_custom_call.1} parent=1 // pred_fallthru
      _
    // Predicated region
    $region30: #{tpu_custom_call.1} parent=1 // pred_check
      _
    $region31: #{tpu_custom_call.1} parent=1 // pred_check_branch
      %29 = sbr.rel (0) target = $region33
    $region32: #{tpu_custom_call.1} parent=1 // pred_region
      _
    $region33: #{tpu_custom_call.1} parent=1 // pred_fallthru
      _
    %v30 = vld [vmem:[%s0] sm:$0xff]
    %v31 = vld [vmem:[%s4] sm:$0xff]
    %v32 = vld [vmem:[%s4 + $0x8] sm:$0xff]
    %v33 = vld [vmem:[%s4 + $0x10] sm:$0xff]
    %v34 = vld [vmem:[%s4 + $0x18] sm:$0xff]
    %v35 = vld [vmem:[%s7] sm:$0x1]
    %v36 = vlaneseq
    %v37 = vshrl.u32 %v36, 7
    %v38 = vsub.s32 0, %v37
    %v39 = vrot.slane %v35, %v38
    %vm40 = vcmask 261120
    %v42 = vsel %vm40, %v30, 0
    %44 = vmatprep.subr.mxu0 0.0
    %45 = vmatpush1.msra.mxu0 %v31
    %46 = vmatprep.subr.mxu0 0.0
    %47 = vmatpush1.msra.mxu0 %v32
    %48 = vmatprep.subr.mxu0 0.0
    %49 = vmatpush1.msra.mxu0 %v33
    %50 = vmatprep.subr.mxu0 0.0
    %51 = vmatpush1.msra.mxu0 %v34
    %52 = vmatprep.subr.mxu0 0.0
    %53 = vmatpush1.msra.mxu0 0.0
    %54 = vmatprep.subr.mxu0 0.0
    %55 = vmatpush1.msra.mxu0 0.0
    %56 = vmatprep.subr.mxu0 0.0
    %57 = vmatpush1.msra.mxu0 0.0
    %58 = vmatprep.subr.mxu0 0.0
    %59 = vmatpush1.msra.mxu0 0.0
    %60 = vmatprep.subr.mxu0 0.0
    %61 = vmatpush1.msra.mxu0 0.0
    %62 = vmatprep.subr.mxu0 0.0
    %63 = vmatpush1.msra.mxu0 0.0
    %64 = vmatprep.subr.mxu0 0.0
    %65 = vmatpush1.msra.mxu0 0.0
    %66 = vmatprep.subr.mxu0 0.0
    %67 = vmatpush1.msra.mxu0 0.0
    %68 = vmatprep.subr.mxu0 0.0
    %69 = vmatpush1.msra.mxu0 0.0
    %70 = vmatprep.subr.mxu0 0.0
    %71 = vmatpush1.msra.mxu0 0.0
    %72 = vmatprep.subr.mxu0 0.0
    %73 = vmatpush1.msra.mxu0 0.0
    %74 = vmatprep.subr.mxu0 0.0
    %75 = vmatpush1.msra.mxu0 0.0
    %76 = vmatprep.subr.mxu0 0.0
    %77 = vmatpush1.msra.mxu0 0.0
    %78 = vmatprep.subr.mxu0 0.0
    %79 = vmatpush1.msra.mxu0 0.0
    %80 = vmatprep.subr.mxu0 0.0
    %81 = vmatpush1.msra.mxu0 0.0
    %82 = vmatprep.subr.mxu0 0.0
    %83 = vmatpush1.msra.mxu0 0.0
    %84 = vmatprep.subr.mxu0 0.0
    %85 = vmatpush1.msra.mxu0 0.0
    %86 = vmatprep.subr.mxu0 0.0
    %87 = vmatpush1.msra.mxu0 0.0
    %88 = vmatprep.subr.mxu0 0.0
    %89 = vmatpush1.msra.mxu0 0.0
    %90 = vmatprep.subr.mxu0 0.0
    %91 = vmatpush1.msra.mxu0 0.0
    %92 = vmatprep.subr.mxu0 0.0
    %93 = vmatpush1.msra.mxu0 0.0
    %94 = vmatprep.subr.mxu0 0.0
    %95 = vmatpush1.msra.mxu0 0.0
    %96 = vmatprep.subr.mxu0 0.0
    %97 = vmatpush1.msra.mxu0 0.0
    %98 = vmatprep.subr.mxu0 0.0
    %99 = vmatpush1.msra.mxu0 0.0
    %100 = vmatprep.subr.mxu0 0.0
    %101 = vmatpush1.msra.mxu0 0.0
    %102 = vmatprep.subr.mxu0 0.0
    %103 = vmatpush1.msra.mxu0 0.0
    %104 = vmatprep.subr.mxu0 0.0
    %105 = vmatpush1.msra.mxu0 0.0
    %106 = vmatprep.subr.mxu0 0.0
    %107 = vmatpush1.msra.mxu0 0.0
    %108 = vmatprep.mubr.f32.mxu0 0.0
    %109 = vmatmul.mubr.f32.gmra.mrb[0].mxu0 %v42
    %v110 = vpop.f32.mrb[0].mxu0
    %v111 = vadd.f32 %v39, %v110
    %v112 = vpop.f32.mrb[0].mxu0
    %113 = vdwg.mxu0
    %v114 = vld [vmem:[%s1] sm:$0xff]
    %v115 = vld [vmem:[%s5] sm:$0xff]
    %v116 = vld [vmem:[%s5 + $0x8] sm:$0xff]
    %v117 = vld [vmem:[%s5 + $0x10] sm:$0xff]
    %v118 = vld [vmem:[%s5 + $0x18] sm:$0xff]
    %v119 = vld [vmem:[%s7 + $0x1] sm:$0x1]
    %v120 = vlaneseq
    %v121 = vshrl.u32 %v120, 7
    %v122 = vsub.s32 0, %v121
    %v123 = vrot.slane %v119, %v122
    %v125 = vsel %vm40, %v114, 0
    %127 = vmatprep.subr.mxu0 0.0
    %128 = vmatpush1.msra.mxu0 %v115
    %129 = vmatprep.subr.mxu0 0.0
    %130 = vmatpush1.msra.mxu0 %v116
    %131 = vmatprep.subr.mxu0 0.0
    %132 = vmatpush1.msra.mxu0 %v117
    %133 = vmatprep.subr.mxu0 0.0
    %134 = vmatpush1.msra.mxu0 %v118
    %135 = vmatprep.subr.mxu0 0.0
    %136 = vmatpush1.msra.mxu0 0.0
    %137 = vmatprep.subr.mxu0 0.0
    %138 = vmatpush1.msra.mxu0 0.0
    %139 = vmatprep.subr.mxu0 0.0
    %140 = vmatpush1.msra.mxu0 0.0
    %141 = vmatprep.subr.mxu0 0.0
    %142 = vmatpush1.msra.mxu0 0.0
    %143 = vmatprep.subr.mxu0 0.0
    %144 = vmatpush1.msra.mxu0 0.0
    %145 = vmatprep.subr.mxu0 0.0
    %146 = vmatpush1.msra.mxu0 0.0
    %147 = vmatprep.subr.mxu0 0.0
    %148 = vmatpush1.msra.mxu0 0.0
    %149 = vmatprep.subr.mxu0 0.0
    %150 = vmatpush1.msra.mxu0 0.0
    %151 = vmatprep.subr.mxu0 0.0
    %152 = vmatpush1.msra.mxu0 0.0
    %153 = vmatprep.subr.mxu0 0.0
    %154 = vmatpush1.msra.mxu0 0.0
    %155 = vmatprep.subr.mxu0 0.0
    %156 = vmatpush1.msra.mxu0 0.0
    %157 = vmatprep.subr.mxu0 0.0
    %158 = vmatpush1.msra.mxu0 0.0
    %159 = vmatprep.subr.mxu0 0.0
    %160 = vmatpush1.msra.mxu0 0.0
    %161 = vmatprep.subr.mxu0 0.0
    %162 = vmatpush1.msra.mxu0 0.0
    %163 = vmatprep.subr.mxu0 0.0
    %164 = vmatpush1.msra.mxu0 0.0
    %165 = vmatprep.subr.mxu0 0.0
    %166 = vmatpush1.msra.mxu0 0.0
    %167 = vmatprep.subr.mxu0 0.0
    %168 = vmatpush1.msra.mxu0 0.0
    %169 = vmatprep.subr.mxu0 0.0
    %170 = vmatpush1.msra.mxu0 0.0
    %171 = vmatprep.subr.mxu0 0.0
    %172 = vmatpush1.msra.mxu0 0.0
    %173 = vmatprep.subr.mxu0 0.0
    %174 = vmatpush1.msra.mxu0 0.0
    %175 = vmatprep.subr.mxu0 0.0
    %176 = vmatpush1.msra.mxu0 0.0
    %177 = vmatprep.subr.mxu0 0.0
    %178 = vmatpush1.msra.mxu0 0.0
    %179 = vmatprep.subr.mxu0 0.0
    %180 = vmatpush1.msra.mxu0 0.0
    %181 = vmatprep.subr.mxu0 0.0
    %182 = vmatpush1.msra.mxu0 0.0
    %183 = vmatprep.subr.mxu0 0.0
    %184 = vmatpush1.msra.mxu0 0.0
    %185 = vmatprep.subr.mxu0 0.0
    %186 = vmatpush1.msra.mxu0 0.0
    %187 = vmatprep.subr.mxu0 0.0
    %188 = vmatpush1.msra.mxu0 0.0
    %189 = vmatprep.subr.mxu0 0.0
    %190 = vmatpush1.msra.mxu0 0.0
    %191 = vmatprep.mubr.f32.mxu0 0.0
    %192 = vmatmul.mubr.f32.gmra.mrb[0].mxu0 %v125
    %v193 = vpop.f32.mrb[0].mxu0
    %v194 = vadd.f32 %v123, %v193
    %v195 = vpop.f32.mrb[0].mxu0
    %196 = vdwg.mxu0
    %v197 = vld [vmem:[%s2] sm:$0xff]
    %v198 = vld [vmem:[%s6] sm:$0x1]
    %200 = vset.pattern.permute.xlu0 0
    %201 = vperm.xlu0 %200, %v197
    %v202 = vpop.permute.xlu0 %201
    %v204 = vlaneseq
    %v205 = vshrl.u32 %v204, 7
    %v206 = vsub.s32 0, %v205
    %v207 = vrot.slane %v198, %v206
    %v208 = vmul.f32 %v202, %v207
    %v209 = vld [vmem:[%s3] sm:$0xff]
    %v210 = vld [vmem:[%s6 + $0x1] sm:$0x1]
    %212 = vset.pattern.permute.xlu0 0
    %213 = vperm.xlu0 %212, %v209
    %v214 = vpop.permute.xlu0 %213
    %v216 = vlaneseq
    %v217 = vshrl.u32 %v216, 7
    %v218 = vsub.s32 0, %v217
    %v219 = vrot.slane %v210, %v218
    %v220 = vmul.f32 %v214, %v219
    %v221 = vadd.f32 %v208, %v220
    %v222 = vld [vmem:[%s7 + $0x2] sm:$0x1]
    %v223 = vlaneseq
    %v224 = vshrl.u32 %v223, 7
    %v225 = vsub.s32 0, %v224
    %v226 = vrot.slane %v222, %v225
    %v227 = vadd.f32 %v221, %v226
    %v228 = vadd.f32 %v111, %v194
    %v229 = vadd.f32 %v228, %v227
    %vm230 = vcmask 15360
    %v231 = vsel %vm230, %v229, -inf
    %232 = vmax.xlane.f32.xlu0 %v231
    %v233 = vpop.xlane.xlu0 %232
    %v234 = vsub.f32 %v229, %v233
    %v235 = vmul.f32 %v234, 1.442695
    %v236 = vpow.pop %v235
    %v237 = vsel %vm230, %v236, 0.0
    %238 = vadd.xlane.f32.xlu0 %v237
    %v239 = vpop.xlane.xlu0 %238
    %v240 = vrcp.pop %v239
    %v241 = vmul.f32 %v236, %v240
    %v242 = vmax.f32 %v111, %v194
    %v243 = vmax.f32 %v242, %v227
    %v244 = vsub.f32 %v111, %v243
    %v245 = vmul.f32 %v244, 1.442695
    %v246 = vpow.pop %v245
    %v247 = vsub.f32 %v194, %v243
    %v248 = vmul.f32 %v247, 1.442695
    %v249 = vpow.pop %v248
    %v250 = vsub.f32 %v227, %v243
    %v251 = vmul.f32 %v250, 1.442695
    %v252 = vpow.pop %v251
    %v253 = vadd.f32 %v246, %v249
    %v254 = vadd.f32 %v253, %v252
    %v255 = vrcp.pop %v254
    %v256 = vmul.f32 %v246, %v255
    %v257 = vmul.f32 %v249, %v255
    %v258 = vmul.f32 %v252, %v255
    %260 = vrot.lane.b32.xlu0 %v256, 2
    %v261 = vpop.permute.xlu0 %260
    %264 = vrot.lane.b32.xlu0 %v257, 3
    %v265 = vpop.permute.xlu0 %264
    %268 = vrot.lane.b32.xlu0 %v258, 4
    %v269 = vpop.permute.xlu0 %268
    %271 = vrot.lane.b32.xlu0 %v256, 4
    %v272 = vpop.permute.xlu0 %271
    %274 = vrot.lane.b32.xlu0 %v257, 5
    %v275 = vpop.permute.xlu0 %274
    %277 = vrot.lane.b32.xlu0 %v258, 6
    %v278 = vpop.permute.xlu0 %277
    %v280 = vsel %vm230, %v241, %v261
    %vm281 = vcmask 23552
    %v282 = vsel %vm281, %v280, %v265
    %vm283 = vcmask 31744
    %v284 = vsel %vm283, %v282, %v269
    %vm285 = vcmask 39936
    %v286 = vsel %vm285, %v284, %v272
    %vm287 = vcmask 48128
    %v288 = vsel %vm287, %v286, %v275
    %vm289 = vcmask 56320
    %v290 = vsel %vm289, %v288, %v278
    %vm291 = vcmask 64512
    %292 = vst.msk [vmem:[#allocation2] sm:$0xff] %vm291, %v290
    // Predicated region
    $region34: #{tpu_custom_call.1} parent=1 // pred_check
      _
    $region35: #{tpu_custom_call.1} parent=1 // pred_check_branch
      %294 = sbr.rel (0) target = $region37
    $region36: #{tpu_custom_call.1} parent=1 // pred_region
      %s296 = ssub.s32 128, 128
      %297 = vsyncadd [#allocation3], %s296
      %s299 = sshll.u32 [#allocation2], 4
      %s300 = int_to_ptr.vmem [resolvable:$true] %s299
      %302 = dma.vmem_to_hbm [thread:$0]  %s300, 128, %s8, [#allocation3]
    $region37: #{tpu_custom_call.1} parent=1 // pred_fallthru
      _
    // Predicated region
    $region38: #{tpu_custom_call.1} parent=1 // pred_check
      _
    $region39: #{tpu_custom_call.1} parent=1 // pred_check_branch
      %304 = sbr.rel (0) target = $region41
    $region40: #{tpu_custom_call.1} parent=1 // pred_region
      %305 = dma.done [#allocation3], 128
    $region41: #{tpu_custom_call.1} parent=1 // pred_fallthru
      _
    %306 = vsyncpa [#allocation3], 1

</llo_original>
